<compile_context>
chip_gen: v7x
topology: tpu7x:2x2x1
jax: 0.10.0
libtpu: 0.0.40
codegen_flags: <defaults>
</compile_context>

<pallas_src>
import jax
import jax.numpy as jnp
from jax.experimental import pallas as pl
from jax.experimental.pallas import tpu as pltpu

# Below this many rows the fused-XLA fallback wins (kernel launch + grid
# fixed cost ~ a few microseconds dwarfs the useful work).
_MIN_PALLAS_ROWS = 2048


def _round_up(x: int, m: int) -> int:
    return ((x + m - 1) // m) * m


def _sublane(dtype) -> int:
    # Sublane packing: 8 for 4-byte, 16 for 2-byte, 32 for 1-byte dtypes.
    itemsize = jnp.dtype(dtype).itemsize
    return max(8, 32 // max(1, itemsize))


def _periodic_kernel(x_ref, out_ref):
    d = x_ref.shape[-1]
    # f32 compute for the transcendentals (safe on v5e's VPU/EUP; no-op for
    # f32 inputs), then two sub-slice stores that realize the concat in-place.
    x = x_ref[...].astype(jnp.float32)
    out_ref[:, :d] = jnp.sin(x).astype(out_ref.dtype)
    out_ref[:, d:] = jnp.cos(x).astype(out_ref.dtype)


def periodic_layer(x: jax.Array, *, tile_rows: int = 4096,
                   force_pallas: bool = False) -> jax.Array:
    """x: [b, d] array -> [b, 2*d] = concat(sin(x), cos(x), axis=1)."""
    if not jnp.issubdtype(x.dtype, jnp.floating):
        # torch.sin/cos promote integer inputs to floating point.
        x = x.astype(jnp.float32)

    b, d = x.shape

    if b < _MIN_PALLAS_ROWS and not force_pallas:
        # Tiny workloads: a fused XLA elementwise op beats any kernel launch.
        return jnp.concatenate([jnp.sin(x), jnp.cos(x)], axis=1)

    sub = _sublane(x.dtype)
    # Aim for >= 2 grid steps (so v7x's two TCs both get work), capped at
    # tile_rows; always a multiple of the dtype's sublane count.
    tile = min(_round_up(max(tile_rows, sub), sub),
               max(sub, _round_up(pl.cdiv(b, 2), sub)))
    grid = (pl.cdiv(b, tile),)  # partial last block handled/masked by Pallas

    return pl.pallas_call(
        _periodic_kernel,
        out_shape=jax.ShapeDtypeStruct((b, 2 * d), x.dtype),
        grid=grid,
        in_specs=[pl.BlockSpec((tile, d), lambda i: (i, 0))],
        out_specs=pl.BlockSpec((tile, 2 * d), lambda i: (i, 0)),
        compiler_params=pltpu.CompilerParams(
            dimension_semantics=("parallel",),  # shard grid across v7x's 2 TCs
        ),
    )(x)


if __name__ == "__main__":
    key = jax.random.PRNGKey(0)

    # Case 1: the literal module usage ([b, 3] coords), small batch.
    # Exercise the actual Pallas kernel path (force_pallas), single grid step.
    x_small = jax.random.normal(key, (8, 3), dtype=jnp.float32)
    out_small = periodic_layer(x_small, force_pallas=True)
    jax.block_until_ready(out_small)
    ref_small = jnp.concatenate([jnp.sin(x_small), jnp.cos(x_small)], axis=1)
    assert out_small.shape == (8, 6), out_small.shape
    assert jnp.allclose(out_small, ref_small, atol=1e-5), "small-case mismatch"

    # Case 1b: same small shape through the public wrapper (fused-XLA fallback).
    out_fb = periodic_layer(x_small)
    assert jnp.allclose(out_fb, ref_small, atol=1e-5), "fallback mismatch"

    # Case 2: multi-step grid with a partial last block (40 rows, tile 16
    # -> grid of 3, last block half-full) — checks masked writeback.
    x_part = jax.random.normal(jax.random.PRNGKey(0), (40, 3), dtype=jnp.float32)
    out_part = periodic_layer(x_part, tile_rows=16, force_pallas=True)
    jax.block_until_ready(out_part)
    ref_part = jnp.concatenate([jnp.sin(x_part), jnp.cos(x_part)], axis=1)
    assert out_part.shape == (40, 6), out_part.shape
    assert jnp.allclose(out_part, ref_part, atol=1e-5), "partial-block mismatch"

    # Case 3: batch large enough to take the Pallas path by default
    # (tile picked so both v7x TCs would get a grid step).
    x_big = jax.random.normal(jax.random.PRNGKey(0), (4096, 3), dtype=jnp.float32)
    out_big = periodic_layer(x_big)
    jax.block_until_ready(out_big)
    ref_big = jnp.concatenate([jnp.sin(x_big), jnp.cos(x_big)], axis=1)
    assert out_big.shape == (4096, 6), out_big.shape
    assert jnp.allclose(out_big, ref_big, atol=1e-5), "kernel mismatch"

    print("KERNEL_OK")
</pallas_src>

<mosaic_0001>
module attributes {stable_mosaic.version = 11 : i64} {
  func.func @_periodic_kernel(%arg0: i32, %arg1: memref<8x3xf32, #tpu.memory_space<vmem>>, %arg2: memref<8x6xf32, #tpu.memory_space<vmem>>) attributes {dimension_semantics = [#tpu.dimension_semantics<parallel>], iteration_bounds = array<i64: 1>, scalar_prefetch = 0 : i64, scratch_operands = 0 : i64, tpu.core_type = #tpu.core_type<tc>, window_params = [{transform_indices = @transform_0, window_bounds = array<i64: 8, 3>}, {transform_indices = @transform_1, window_bounds = array<i64: 8, 6>}]} {
    %c0 = arith.constant 0 : index
    %c0_0 = arith.constant 0 : index
    %0 = vector.load %arg1[%c0, %c0_0] : memref<8x3xf32, #tpu.memory_space<vmem>>, vector<8x3xf32>
    %1 = math.sin %0 : vector<8x3xf32>
    %c0_1 = arith.constant 0 : index
    %c0_2 = arith.constant 0 : index
    %2 = vector.load %arg2[%c0_1, %c0_2] : memref<8x6xf32, #tpu.memory_space<vmem>>, vector<8x3xf32>
    tpu.vector_store %arg2[%c0_1, %c0_2], %1 {strides = array<i32>} : memref<8x6xf32, #tpu.memory_space<vmem>>, vector<8x3xf32>,
    %3 = math.cos %0 : vector<8x3xf32>
    %c0_3 = arith.constant 0 : index
    %c3 = arith.constant 3 : index
    %4 = vector.load %arg2[%c0_3, %c3] : memref<8x6xf32, #tpu.memory_space<vmem>>, vector<8x3xf32>
    tpu.vector_store %arg2[%c0_3, %c3], %3 {strides = array<i32>} : memref<8x6xf32, #tpu.memory_space<vmem>>, vector<8x3xf32>,
    return
  }
  func.func @transform_0(%arg0: i32) -> (i32, i32) {
    %c0_i32 = arith.constant 0 : i32
    %c0_i32_0 = arith.constant 0 : i32
    return %arg0, %c0_i32 : i32, i32
  }
  func.func @transform_1(%arg0: i32) -> (i32, i32) {
    %c0_i32 = arith.constant 0 : i32
    %c0_i32_0 = arith.constant 0 : i32
    return %arg0, %c0_i32 : i32, i32
  }
}

</mosaic_0001>

<llo_original>
// kernel: tpu_custom_call.1
$region0: #{tpu_custom_call.1}
  #allocation0 [shape = 'u32[]', space=smem, size = 0x4, offset = 0x4, fixed_abs, tag = 'smem constant byte address 0x4 - core index']
  #allocation1 [shape = 'u32[144,128]{1,0:T(1,128)}', space=vmem, size = 0x12000, scoped, tag = 'internal scratch']
  %s0 = inlined_call_operand.vmem [shape: f32[8,3], index: 0, kind: input, shape index: {}]
  %s1 = inlined_call_operand.hbm [shape: f32[8,6], index: 1, kind: output, shape index: {}]
  %s2 = sld [smem:[#allocation0]]
  $region14: #{tpu_custom_call.1} parent=0
    _
  %s4 = ssub.s32 1, %s2
  %s5 = scalar_select 0, %s4, %s2
  $region1: #{tpu_custom_call.1} parent=0
    #allocation2 [shape = 'u8[4096]{0}', space=vmem, size = 0x1000, scoped, tag = 'output window, operand 0, single buffered']
    #allocation3 [shape = 's32[1]{0}', space=sflag, size = 0x4, scoped, tag = 'scoped memory for tpu_custom_call.1']
    %6 = vsyncpa [#allocation3], 0
    // Predicated region
    $region2: #{tpu_custom_call.1} parent=1 // pred_check
      _
    $region3: #{tpu_custom_call.1} parent=1 // pred_check_branch
      %8 = sbr.rel (0) target = $region5
    $region4: #{tpu_custom_call.1} parent=1 // pred_region
      _
    $region5: #{tpu_custom_call.1} parent=1 // pred_fallthru
      _
    %v9 = vld [vmem:[%s0] sm:$0xff]
    %v10 = vand.u32 2147483647, %v9
    %vm11 = vcmp.le.f32.partialorder %v10, 0.7853982
    %vm12 = vcmp.lt.s32.totalorder %v9, 0
    %v13 = vand.u32 %v9, 2139095040
    %v14 = vshrl.u32 %v13, 23
    %v15 = vsub.s32 %v14, 127
    %v16 = vand.u32 2147483647, %v9
    %v17 = vand.u32 %v16, 8388607
    %v18 = vor.u32 %v17, 8388608
    %v19 = vsub.s32 0, %v18
    %v20 = vadd.s32 %v15, 1
    %vm21 = vcmp.gt.s32.totalorder %v20, 0
    %v22 = vsel %vm21, %v20, 0
    %v23 = vshrl.u32 %v22, 5
    %v24 = vand.u32 %v22, 31
    %v25 = vsub.s32 32, %v24
    %v26 = vshrl.u32 683565275, %v25
    %v27 = vshll.u32 683565275, %v24
    %v28 = vshrl.u32 2475754826, %v25
    %v29 = vor.u32 %v27, %v28
    %v30 = vshll.u32 2475754826, %v24
    %v31 = vshrl.u32 2131351028, %v25
    %v32 = vor.u32 %v30, %v31
    %v33 = vshll.u32 2131351028, %v24
    %v34 = vshrl.u32 2102212464, %v25
    %v35 = vor.u32 %v33, %v34
    %v36 = vshll.u32 2102212464, %v24
    %v37 = vshrl.u32 920167782, %v25
    %v38 = vor.u32 %v36, %v37
    %v39 = vshll.u32 920167782, %v24
    %v40 = vshrl.u32 1326507024, %v25
    %v41 = vor.u32 %v39, %v40
    %vm42 = vcmp.lt.s32.totalorder %v23, 1
    %vm43 = vcmp.lt.s32.totalorder %v23, 2
    %vm44 = vcmp.lt.s32.totalorder %v23, 3
    %vm45 = vcmp.lt.s32.totalorder %v23, 4
    %v46 = vsel %vm42, %v26, %v29
    %v47 = vsel %vm45, %v35, 2102212464
    %v48 = vsel %vm44, %v32, %v47
    %v49 = vsel %vm43, %v46, %v48
    %v50 = vsel %vm42, %v29, %v32
    %v51 = vsel %vm45, %v38, 920167782
    %v52 = vsel %vm44, %v35, %v51
    %v53 = vsel %vm43, %v50, %v52
    %v54 = vsel %vm42, %v32, %v35
    %v55 = vsel %vm45, %v41, 1326507024
    %v56 = vsel %vm44, %v38, %v55
    %v57 = vsel %vm43, %v54, %v56
    %v58 = vshll.u32 %v18, 8
    %v59 = vmul.u32.u64.compose %v58, %v57
    %v60 = vextract.low.u32 %v59
    %v61 = vextract.high.u32 %v59
    %v62 = vmul.u32.u64.compose %v58, %v53
    %v63 = vextract.low.u32 %v62
    %v64 = vextract.high.u32 %v62
    %v65 = vmul.u32 %v58, %v49
    %v66 = vadd.s32 %v61, %v63
    %vm67 = vc.u32 %v61, %v63
    %v68 = vadd.s32 %v64, 1
    %v69 = vsel %vm67, %v68, %v64
    %v70 = vadd.s32 %v65, %v69
    %v71 = vadd.s32 %v70, 536870912
    %v72 = vshrl.u32 %v71, 30
    %v73 = vshll.u32 %v72, 30
    %v74 = vsub.s32 %v70, %v73
    %vm75 = vcmp.lt.s32.totalorder %v74, 0
    %v76 = vsub.s32 0, %v74
    %v77 = vsel %vm75, %v76, %v74
    %v78 = vclz %v77
    %v79 = vsub.s32 %v78, 2
    %vm80 = vcmp.gt.s32.totalorder 0, %v79
    %v81 = vsel %vm80, 0, %v79
    %v82 = vsub.s32 32, %v81
    %v83 = vshll.u32 %v74, %v81
    %v84 = vshrl.u32 %v66, %v82
    %v85 = vor.u32 %v83, %v84
    %v86 = vsub.s32 4294967266, %v81
    %v87 = vadd.s32 %v86, 127
    %v88 = vshll.u32 %v87, 23
    %v89 = vor.u32 4788187, %v88
    %v90 = vand.u32 2147483647, %v89
    %v92 = vcvt.s32.f32 %v85
    %v93 = vmul.f32 %v92, %v90
    %v94 = vxor.u32 %v93, 2147483648
    %v95 = vsel %vm12, %v94, %v93
    %v96 = vsub.s32 4, %v72
    %v97 = vsel %vm12, %v96, %v72
    %v98 = vsel %vm11, %v9, %v95
    %v99 = vsel %vm11, 0, %v97
    %v100 = vcosq.f32.pop %v98
    %v101 = vsinq.f32.pop %v98
    %vm102 = vweird.f32 %v9
    %v103 = vadd.s32 %v99, 3
    %v104 = vand.u32 %v103, 3
    %vm105 = vcmp.lt.s32.totalorder %v104, 2
    %vm106 = vcmp.eq.s32.totalorder %v104, 0
    %v107 = vxor.u32 %v101, 2147483648
    %v108 = vsel %vm106, %v100, %v107
    %vm109 = vcmp.eq.s32.totalorder %v104, 2
    %v110 = vxor.u32 %v100, 2147483648
    %v111 = vsel %vm109, %v110, %v101
    %v112 = vsel %vm105, %v108, %v111
    %v113 = vsel %vm102, nan, %v112
    %vm114 = vcmask 23552
    %115 = vst.msk [vmem:[#allocation2] sm:$0xff] %vm114, %v113
    %v116 = vand.u32 2147483647, %v9
    %vm117 = vcmp.le.f32.partialorder %v116, 0.7853982
    %vm118 = vcmp.lt.s32.totalorder %v9, 0
    %v119 = vand.u32 %v9, 2139095040
    %v120 = vshrl.u32 %v119, 23
    %v121 = vsub.s32 %v120, 127
    %v122 = vand.u32 2147483647, %v9
    %v123 = vand.u32 %v122, 8388607
    %v124 = vor.u32 %v123, 8388608
    %v125 = vsub.s32 0, %v124
    %v126 = vadd.s32 %v121, 1
    %vm127 = vcmp.gt.s32.totalorder %v126, 0
    %v128 = vsel %vm127, %v126, 0
    %v129 = vshrl.u32 %v128, 5
    %v130 = vand.u32 %v128, 31
    %v131 = vsub.s32 32, %v130
    %v132 = vshrl.u32 683565275, %v131
    %v133 = vshll.u32 683565275, %v130
    %v134 = vshrl.u32 2475754826, %v131
    %v135 = vor.u32 %v133, %v134
    %v136 = vshll.u32 2475754826, %v130
    %v137 = vshrl.u32 2131351028, %v131
    %v138 = vor.u32 %v136, %v137
    %v139 = vshll.u32 2131351028, %v130
    %v140 = vshrl.u32 2102212464, %v131
    %v141 = vor.u32 %v139, %v140
    %v142 = vshll.u32 2102212464, %v130
    %v143 = vshrl.u32 920167782, %v131
    %v144 = vor.u32 %v142, %v143
    %v145 = vshll.u32 920167782, %v130
    %v146 = vshrl.u32 1326507024, %v131
    %v147 = vor.u32 %v145, %v146
    %vm148 = vcmp.lt.s32.totalorder %v129, 1
    %vm149 = vcmp.lt.s32.totalorder %v129, 2
    %vm150 = vcmp.lt.s32.totalorder %v129, 3
    %vm151 = vcmp.lt.s32.totalorder %v129, 4
    %v152 = vsel %vm148, %v132, %v135
    %v153 = vsel %vm151, %v141, 2102212464
    %v154 = vsel %vm150, %v138, %v153
    %v155 = vsel %vm149, %v152, %v154
    %v156 = vsel %vm148, %v135, %v138
    %v157 = vsel %vm151, %v144, 920167782
    %v158 = vsel %vm150, %v141, %v157
    %v159 = vsel %vm149, %v156, %v158
    %v160 = vsel %vm148, %v138, %v141
    %v161 = vsel %vm151, %v147, 1326507024
    %v162 = vsel %vm150, %v144, %v161
    %v163 = vsel %vm149, %v160, %v162
    %v164 = vshll.u32 %v124, 8
    %v165 = vmul.u32.u64.compose %v164, %v163
    %v166 = vextract.low.u32 %v165
    %v167 = vextract.high.u32 %v165
    %v168 = vmul.u32.u64.compose %v164, %v159
    %v169 = vextract.low.u32 %v168
    %v170 = vextract.high.u32 %v168
    %v171 = vmul.u32 %v164, %v155
    %v172 = vadd.s32 %v167, %v169
    %vm173 = vc.u32 %v167, %v169
    %v174 = vadd.s32 %v170, 1
    %v175 = vsel %vm173, %v174, %v170
    %v176 = vadd.s32 %v171, %v175
    %v177 = vadd.s32 %v176, 536870912
    %v178 = vshrl.u32 %v177, 30
    %v179 = vshll.u32 %v178, 30
    %v180 = vsub.s32 %v176, %v179
    %vm181 = vcmp.lt.s32.totalorder %v180, 0
    %v182 = vsub.s32 0, %v180
    %v183 = vsel %vm181, %v182, %v180
    %v184 = vclz %v183
    %v185 = vsub.s32 %v184, 2
    %vm186 = vcmp.gt.s32.totalorder 0, %v185
    %v187 = vsel %vm186, 0, %v185
    %v188 = vsub.s32 32, %v187
    %v189 = vshll.u32 %v180, %v187
    %v190 = vshrl.u32 %v172, %v188
    %v191 = vor.u32 %v189, %v190
    %v192 = vsub.s32 4294967266, %v187
    %v193 = vadd.s32 %v192, 127
    %v194 = vshll.u32 %v193, 23
    %v195 = vor.u32 4788187, %v194
    %v196 = vand.u32 2147483647, %v195
    %v198 = vcvt.s32.f32 %v191
    %v199 = vmul.f32 %v198, %v196
    %v200 = vxor.u32 %v199, 2147483648
    %v201 = vsel %vm118, %v200, %v199
    %v202 = vsub.s32 4, %v178
    %v203 = vsel %vm118, %v202, %v178
    %v204 = vsel %vm117, %v9, %v201
    %v205 = vsel %vm117, 0, %v203
    %v206 = vcosq.f32.pop %v204
    %v207 = vsinq.f32.pop %v204
    %vm208 = vweird.f32 %v9
    %v209 = vand.u32 %v205, 3
    %vm210 = vcmp.lt.s32.totalorder %v209, 2
    %vm211 = vcmp.eq.s32.totalorder %v209, 0
    %v212 = vxor.u32 %v207, 2147483648
    %v213 = vsel %vm211, %v206, %v212
    %vm214 = vcmp.eq.s32.totalorder %v209, 2
    %v215 = vxor.u32 %v206, 2147483648
    %v216 = vsel %vm214, %v215, %v207
    %v217 = vsel %vm210, %v213, %v216
    %v218 = vsel %vm208, nan, %v217
    %220 = vrot.lane.b32.xlu0 %v218, 3
    %v221 = vpop.permute.xlu0 %220
    %vm223 = vcmask 48152
    %224 = vst.msk [vmem:[#allocation2] sm:$0xff] %vm223, %v221
    // Predicated region
    $region6: #{tpu_custom_call.1} parent=1 // pred_check
      _
    $region7: #{tpu_custom_call.1} parent=1 // pred_check_branch
      %226 = sbr.rel (0) target = $region9
    $region8: #{tpu_custom_call.1} parent=1 // pred_region
      %s228 = ssub.s32 128, 128
      %229 = vsyncadd [#allocation3], %s228
      %s231 = sshll.u32 [#allocation2], 4
      %s232 = int_to_ptr.vmem [resolvable:$true] %s231
      %234 = dma.vmem_to_hbm [thread:$0]  %s232, 128, %s1, [#allocation3]
    $region9: #{tpu_custom_call.1} parent=1 // pred_fallthru
      _
    // Predicated region
    $region10: #{tpu_custom_call.1} parent=1 // pred_check
      _
    $region11: #{tpu_custom_call.1} parent=1 // pred_check_branch
      %236 = sbr.rel (0) target = $region13
    $region12: #{tpu_custom_call.1} parent=1 // pred_region
      %237 = dma.done [#allocation3], 128
    $region13: #{tpu_custom_call.1} parent=1 // pred_fallthru
      _
    %238 = vsyncpa [#allocation3], 1

</llo_original>
